<compile_context>
chip_gen: v7x
topology: tpu7x:2x2x1
jax: 0.10.0
libtpu: 0.0.40
codegen_flags: <defaults>
</compile_context>

<pallas_src>
import functools

import jax
import jax.numpy as jnp
import numpy as np
from jax import lax
from jax.experimental import pallas as pl
from jax.experimental.pallas import tpu as pltpu


# --------------------------------------------------------------------------- #
# Hardware-dependent configuration
# --------------------------------------------------------------------------- #
def _hw_config():
    """Returns (vmem_capacity_bytes, cout_lane_tile_target) for the current backend."""
    vmem_cap = 64 << 20            # conservative default (v7x per-core VMEM)
    lane_target = 128
    try:
        info = pltpu.get_tpu_info()
        cap = int(getattr(info, "vmem_capacity_bytes", 0))
        if cap > 0:
            vmem_cap = cap
    except Exception:
        pass
    try:
        kind = jax.devices()[0].device_kind.lower()
    except Exception:
        kind = ""
    # v6e / v7x have a 256-wide MXU -> 256-lane Cout tiles; v5e (and older) stay at 128.
    if ("v6" in kind) or ("v7" in kind):
        lane_target = 256
    return vmem_cap, lane_target


def _cout_tiling(cout, lane_target):
    if cout <= lane_target:
        return cout, 1
    for t in (lane_target, 128):
        if cout % t == 0:
            return t, cout // t
    # TODO(synk): pad Cout to the next multiple of 128 (and slice the output) for
    # widths like 320/960 instead of falling back to one full-width tile.
    return cout, 1


def _mosaic_params(dim_sem, need_bytes, vmem_cap):
    limit = int(min(max(int(need_bytes), 32 << 20), int(vmem_cap * 0.8)))
    return pltpu.CompilerParams(dimension_semantics=dim_sem, vmem_limit_bytes=limit)


def _conv_need_bytes(H, W, C, Ct, act_in_bytes):
    # Itemized budget: double-buffered pipeline blocks + carried scratch + transients.
    blocks = act_in_bytes + 9 * C * Ct * 2 + H * W * Ct * 2            # in/w/out tiles
    scratch = (H + 2) * (W + 2) * C * 4 + 3 * (H + 2) * W * C * 2      # pad + bf16 slabs
    transients = H * W * Ct * 4 + 3 * H * W * C * 4                    # f32 acc + GN temps
    return 2 * blocks + scratch + transients + (2 << 20)


def _group_mats(channels, groups, hw):
    # rmat: (C, G) per-group reduce (includes 1/(H*W*Cg)); bmat: (G, C) broadcast-back.
    cg = channels // groups
    gid = np.arange(channels) // cg
    rmat = np.zeros((channels, groups), np.float32)
    rmat[np.arange(channels), gid] = 1.0 / float(hw * cg)
    bmat = np.zeros((groups, channels), np.float32)
    bmat[gid, np.arange(channels)] = 1.0
    return jnp.asarray(rmat), jnp.asarray(bmat)


# --------------------------------------------------------------------------- #
# In-kernel helpers (traced inside Pallas kernels)
# --------------------------------------------------------------------------- #
def _gn_silu_parts(parts, rmats, bmats, gammas, betas, eps):
    """GroupNorm + SiLU over channel-partitioned (H*W, Ck) f32 tiles.

    Group statistics are accumulated across all parts with skinny matmuls
    ((1,Ck)@(Ck,G) reduce, (1,G)@(G,Ck) broadcast); variance is centered; all stats f32.
    """
    mean_g = sum(jnp.dot(jnp.sum(p, axis=0, keepdims=True), r,
                         preferred_element_type=jnp.float32)
                 for p, r in zip(parts, rmats))                               # (1, G)
    ds = [p - jnp.dot(mean_g, bm, preferred_element_type=jnp.float32)
          for p, bm in zip(parts, bmats)]
    var_g = sum(jnp.dot(jnp.sum(d * d, axis=0, keepdims=True), r,
                        preferred_element_type=jnp.float32)
                for d, r in zip(ds, rmats))                                   # (1, G)
    inv_g = lax.rsqrt(var_g + eps)                                            # (1, G)
    outs = []
    for d, bm, g, b in zip(ds, bmats, gammas, betas):
        y = d * (jnp.dot(inv_g, bm, preferred_element_type=jnp.float32) * g) + b
        outs.append(y * jax.nn.sigmoid(y))                                    # SiLU
    return outs


def _stage_pad_slabs(parts_hwc, pad_ref, slab_ref):
    """Zero only the halo, write the interior once, build the 3 bf16 dx slabs.

    Runs once per image (j == 0); pad_ref / slab_ref are carried across Cout tiles.
    parts_hwc: list of (channel_offset, (H, W, ck) f32 array).
    """
    Hp2, Wp2, C = pad_ref.shape
    H, W = Hp2 - 2, Wp2 - 2
    dt = pad_ref.dtype
    pad_ref[0:1, :, :] = jnp.zeros((1, Wp2, C), dt)                 # top halo row
    pad_ref[H + 1:H + 2, :, :] = jnp.zeros((1, Wp2, C), dt)         # bottom halo row
    pad_ref[1:H + 1, 0:1, :] = jnp.zeros((H, 1, C), dt)             # left halo col
    pad_ref[1:H + 1, W + 1:W + 2, :] = jnp.zeros((H, 1, C), dt)     # right halo col
    for off, part in parts_hwc:
        ck = part.shape[-1]
        pad_ref[1:H + 1, 1:W + 1, off:off + ck] = part.astype(dt)
    xp = pad_ref[...]
    for dx in range(3):                                             # 3 dx-shifted slabs
        slab_ref[dx] = xp[:, dx:dx + W, :].reshape((H + 2) * W, C).astype(slab_ref.dtype)


def _conv3x3_from_slabs(slab_ref, w_ref, H, W):
    """3x3 SAME conv: 9 bf16 MXU matmuls over the carried slabs (f32 accumulate).

    Per-(dy,dx) LHS is a static leading-dim slice of a carried bf16 slab: no per-tap
    cast, no per-Cout-tile slab rebuild.
    """
    Ct = w_ref.shape[3]
    acc = jnp.zeros((H * W, Ct), jnp.float32)
    for dy in range(3):
        for dx in range(3):
            lhs = slab_ref[dx, dy * W:dy * W + H * W, :]
            acc = acc + jnp.dot(lhs, w_ref[dy, dx],
                                preferred_element_type=jnp.float32)
    return acc


# --------------------------------------------------------------------------- #
# Pallas kernels
# --------------------------------------------------------------------------- #
def _temb_silu_matmul_kernel(t_ref, w_ref, b_ref, o_ref):
    # out = SiLU(temb) @ W + b   (bf16 MXU matmul, f32 accumulate)
    t = t_ref[...]
    t = t * jax.nn.sigmoid(t)
    o_ref[...] = (jnp.dot(t.astype(jnp.bfloat16), w_ref[...],
                          preferred_element_type=jnp.float32) + b_ref[...])


def _gn_silu_conv1_temb_kernel(h_ref, res_ref, rmat_ref, bmat_ref, g_ref, b_ref,
                               w_ref, cb_ref, eb_ref, o_ref, pad_ref, slab_ref,
                               *, H, W, eps):
    # Fused: GroupNorm(concat(h, res)) + SiLU -> 3x3 SAME conv -> +bias +temb bias.
    # GN / pad / slabs are built only at j == 0 and carried across Cout tiles.
    c1 = h_ref.shape[2]
    c2 = res_ref.shape[2]

    @pl.when(pl.program_id(1) == 0)
    def _():
        x1 = h_ref[0].astype(jnp.float32)
        x2 = res_ref[0].astype(jnp.float32)
        rmat = rmat_ref[...]
        bmat = bmat_ref[...]
        g = g_ref[...]
        b = b_ref[...]
        y1, y2 = _gn_silu_parts(
            [x1, x2],
            [rmat[:c1], rmat[c1:]],
            [bmat[:, :c1], bmat[:, c1:]],
            [g[:, :c1], g[:, c1:]],
            [b[:, :c1], b[:, c1:]],
            eps)
        _stage_pad_slabs([(0, y1.reshape(H, W, c1)), (c1, y2.reshape(H, W, c2))],
                         pad_ref, slab_ref)

    acc = _conv3x3_from_slabs(slab_ref, w_ref, H, W) + cb_ref[...] + eb_ref[0]
    o_ref[0] = acc.astype(o_ref.dtype)


def _gn_silu_conv2_res_kernel(x_ref, h_ref, res_ref, rmat_ref, bmat_ref, g_ref, b_ref,
                              w_ref, cb_ref, sw1_ref, sw2_ref, sb_ref, o_ref,
                              pad_ref, slab_ref, *, H, W, eps, inv_scale):
    # Fused: GN(h1)+SiLU -> 3x3 conv -> + 1x1-conv shortcut(h, res) -> * inv_scale.
    C = x_ref.shape[2]

    @pl.when(pl.program_id(1) == 0)
    def _():
        x = x_ref[0].astype(jnp.float32)
        (y,) = _gn_silu_parts([x], [rmat_ref[...]], [bmat_ref[...]],
                              [g_ref[...]], [b_ref[...]], eps)
        _stage_pad_slabs([(0, y.reshape(H, W, C))], pad_ref, slab_ref)

    acc = _conv3x3_from_slabs(slab_ref, w_ref, H, W) + cb_ref[...]
    sc = (jnp.dot(h_ref[0], sw1_ref[...], preferred_element_type=jnp.float32)
          + jnp.dot(res_ref[0], sw2_ref[...], preferred_element_type=jnp.float32)
          + sb_ref[...])
    o_ref[0] = ((acc + sc) * inv_scale).astype(o_ref.dtype)


def _conv3x3_kernel(x_ref, w_ref, cb_ref, o_ref, pad_ref, slab_ref, *, H, W):
    # Plain 3x3 SAME conv (Upsample2D conv); staging at j == 0, carried across tiles.
    C = x_ref.shape[2]

    @pl.when(pl.program_id(1) == 0)
    def _():
        _stage_pad_slabs([(0, x_ref[0].astype(jnp.float32).reshape(H, W, C))],
                         pad_ref, slab_ref)

    acc = _conv3x3_from_slabs(slab_ref, w_ref, H, W) + cb_ref[...]
    o_ref[0] = acc.astype(o_ref.dtype)


# --------------------------------------------------------------------------- #
# Pallas wrappers
# --------------------------------------------------------------------------- #
def temb_proj(temb, w, b, *, cfg):
    vmem_cap, _ = cfg
    N, Tc = temb.shape
    Cout = w.shape[1]
    need = 2 * (N * Tc * 4 + Tc * Cout * 2 + N * Cout * 4) + (1 << 20)
    return pl.pallas_call(
        _temb_silu_matmul_kernel,
        out_shape=jax.ShapeDtypeStruct((N, Cout), jnp.float32),
        grid=(1,),
        in_specs=[
            pl.BlockSpec((N, Tc), lambda i: (0, 0)),
            pl.BlockSpec((Tc, Cout), lambda i: (0, 0)),
            pl.BlockSpec((1, Cout), lambda i: (0, 0)),
        ],
        out_specs=pl.BlockSpec((N, Cout), lambda i: (0, 0)),
        compiler_params=_mosaic_params(("arbitrary",), need, vmem_cap),
    )(temb, w.astype(jnp.bfloat16), b.reshape(1, Cout))


def gn_silu_conv1_temb(h, res, gamma, beta, w, b, temb_bias, *, groups, eps, cfg):
    """GN(concat(h,res)) + SiLU -> 3x3 conv -> +bias +temb bias; no XLA concat."""
    vmem_cap, lane_target = cfg
    N, H, W, c1 = h.shape
    c2 = res.shape[-1]
    C = c1 + c2
    Cout = w.shape[-1]
    Ct, nj = _cout_tiling(Cout, lane_target)
    rmat, bmat = _group_mats(C, groups, H * W)
    need = _conv_need_bytes(H, W, C, Ct, H * W * C * 2)

    out = pl.pallas_call(
        functools.partial(_gn_silu_conv1_temb_kernel, H=H, W=W, eps=eps),
        out_shape=jax.ShapeDtypeStruct((N, H * W, Cout), jnp.bfloat16),
        grid=(N, nj),
        in_specs=[
            pl.BlockSpec((1, H * W, c1), lambda n, j: (n, 0, 0)),
            pl.BlockSpec((1, H * W, c2), lambda n, j: (n, 0, 0)),
            pl.BlockSpec((C, groups), lambda n, j: (0, 0)),
            pl.BlockSpec((groups, C), lambda n, j: (0, 0)),
            pl.BlockSpec((1, C), lambda n, j: (0, 0)),
            pl.BlockSpec((1, C), lambda n, j: (0, 0)),
            pl.BlockSpec((3, 3, C, Ct), lambda n, j: (0, 0, 0, j)),
            pl.BlockSpec((1, Ct), lambda n, j: (0, j)),
            pl.BlockSpec((1, 1, Ct), lambda n, j: (n, 0, j)),
        ],
        out_specs=pl.BlockSpec((1, H * W, Ct), lambda n, j: (n, 0, j)),
        scratch_shapes=[
            pltpu.VMEM((H + 2, W + 2, C), jnp.float32),            # pad staging
            pltpu.VMEM((3, (H + 2) * W, C), jnp.bfloat16),          # carried bf16 slabs
        ],
        compiler_params=_mosaic_params(("parallel", "arbitrary"), need, vmem_cap),
    )(h.reshape(N, H * W, c1), res.reshape(N, H * W, c2), rmat, bmat,
      gamma.reshape(1, C), beta.reshape(1, C),
      w.astype(jnp.bfloat16), b.reshape(1, Cout), temb_bias.reshape(N, 1, Cout))
    return out.reshape(N, H, W, Cout)


def gn_silu_conv2_residual(x, h, res, gamma, beta, w, b, sc_w, sc_b,
                           *, groups, eps, inv_scale, cfg):
    """GN(x)+SiLU -> 3x3 conv -> + 1x1-conv shortcut over (h, res) -> * inv_scale."""
    vmem_cap, lane_target = cfg
    N, H, W, C = x.shape
    c1 = h.shape[-1]
    c2 = res.shape[-1]
    Cout = w.shape[-1]
    Ct, nj = _cout_tiling(Cout, lane_target)
    rmat, bmat = _group_mats(C, groups, H * W)
    assert sc_w is not None, "UpBlock2D resnets always use a conv shortcut (cin != cout)"
    sw1 = sc_w[:c1].astype(jnp.bfloat16)
    sw2 = sc_w[c1:].astype(jnp.bfloat16)
    need = (_conv_need_bytes(H, W, C, Ct, H * W * (C + c1 + c2) * 2)
            + 2 * (c1 + c2) * Ct * 2)

    out = pl.pallas_call(
        functools.partial(_gn_silu_conv2_res_kernel, H=H, W=W, eps=eps,
                          inv_scale=inv_scale),
        out_shape=jax.ShapeDtypeStruct((N, H * W, Cout), jnp.bfloat16),
        grid=(N, nj),
        in_specs=[
            pl.BlockSpec((1, H * W, C), lambda n, j: (n, 0, 0)),
            pl.BlockSpec((1, H * W, c1), lambda n, j: (n, 0, 0)),
            pl.BlockSpec((1, H * W, c2), lambda n, j: (n, 0, 0)),
            pl.BlockSpec((C, groups), lambda n, j: (0, 0)),
            pl.BlockSpec((groups, C), lambda n, j: (0, 0)),
            pl.BlockSpec((1, C), lambda n, j: (0, 0)),
            pl.BlockSpec((1, C), lambda n, j: (0, 0)),
            pl.BlockSpec((3, 3, C, Ct), lambda n, j: (0, 0, 0, j)),
            pl.BlockSpec((1, Ct), lambda n, j: (0, j)),
            pl.BlockSpec((c1, Ct), lambda n, j: (0, j)),
            pl.BlockSpec((c2, Ct), lambda n, j: (0, j)),
            pl.BlockSpec((1, Ct), lambda n, j: (0, j)),
        ],
        out_specs=pl.BlockSpec((1, H * W, Ct), lambda n, j: (n, 0, j)),
        scratch_shapes=[
            pltpu.VMEM((H + 2, W + 2, C), jnp.float32),
            pltpu.VMEM((3, (H + 2) * W, C), jnp.bfloat16),
        ],
        compiler_params=_mosaic_params(("parallel", "arbitrary"), need, vmem_cap),
    )(x.reshape(N, H * W, C), h.reshape(N, H * W, c1), res.reshape(N, H * W, c2),
      rmat, bmat, gamma.reshape(1, C), beta.reshape(1, C),
      w.astype(jnp.bfloat16), b.reshape(1, Cout), sw1, sw2, sc_b.reshape(1, Cout))
    return out.reshape(N, H, W, Cout)


def conv3x3(x, w, b, *, cfg):
    """Plain 3x3 SAME conv (upsampler); padding and slabs built in VMEM at j == 0."""
    vmem_cap, lane_target = cfg
    N, H, W, C = x.shape
    Cout = w.shape[-1]
    Ct, nj = _cout_tiling(Cout, lane_target)
    need = _conv_need_bytes(H, W, C, Ct, H * W * C * 2)

    out = pl.pallas_call(
        functools.partial(_conv3x3_kernel, H=H, W=W),
        out_shape=jax.ShapeDtypeStruct((N, H * W, Cout), jnp.bfloat16),
        grid=(N, nj),
        in_specs=[
            pl.BlockSpec((1, H * W, C), lambda n, j: (n, 0, 0)),
            pl.BlockSpec((3, 3, C, Ct), lambda n, j: (0, 0, 0, j)),
            pl.BlockSpec((1, Ct), lambda n, j: (0, j)),
        ],
        out_specs=pl.BlockSpec((1, H * W, Ct), lambda n, j: (n, 0, j)),
        scratch_shapes=[
            pltpu.VMEM((H + 2, W + 2, C), jnp.float32),
            pltpu.VMEM((3, (H + 2) * W, C), jnp.bfloat16),
        ],
        compiler_params=_mosaic_params(("parallel", "arbitrary"), need, vmem_cap),
    )(x.astype(jnp.bfloat16).reshape(N, H * W, C), w.astype(jnp.bfloat16),
      b.reshape(1, Cout))
    return out.reshape(N, H, W, Cout)


# --------------------------------------------------------------------------- #
# Module-level forward (ResnetBlock2D + Upsample2D composition)
# --------------------------------------------------------------------------- #
def resnet_block(h, res, temb, p, *, groups, eps, output_scale_factor, cfg):
    t = temb_proj(temb, p["temb_w"], p["temb_b"], cfg=cfg)                 # (N, Cout) f32
    h1 = gn_silu_conv1_temb(h, res, p["gn1_g"], p["gn1_b"],
                            p["conv1_w"], p["conv1_b"], t,
                            groups=groups, eps=eps, cfg=cfg)               # bf16
    # dropout = 0.0 -> identity
    return gn_silu_conv2_residual(h1, h, res, p["gn2_g"], p["gn2_b"],
                                  p["conv2_w"], p["conv2_b"],
                                  p["sc_w"], p["sc_b"],
                                  groups=groups, eps=eps,
                                  inv_scale=1.0 / output_scale_factor, cfg=cfg)


def upblock2d_forward(hidden_states_nchw, res_hidden_states_tuple_nchw, temb, params,
                      *, groups, eps, output_scale_factor):
    cfg = _hw_config()
    h = jnp.transpose(hidden_states_nchw, (0, 2, 3, 1)).astype(jnp.bfloat16)
    res_list = [jnp.transpose(r, (0, 2, 3, 1)).astype(jnp.bfloat16)
                for r in res_hidden_states_tuple_nchw]
    for rp in params["resnets"]:
        res = res_list.pop()                  # tuple[-1], then shrink
        # Skip-connection channel concat is avoided: h and res go in separately and
        # GN stats / conv1 Cin / 1x1-shortcut weights are split inside the kernels.
        h = resnet_block(h, res, temb, rp, groups=groups, eps=eps,
                         output_scale_factor=output_scale_factor, cfg=cfg)
    if params.get("upsampler") is not None:
        up = params["upsampler"]
        # TODO(synk): fuse the nearest-2x repeat into the upsampler conv kernel
        # (in-VMEM replication / phase-decomposed 2x2 taps); XLA glue on bf16 for now.
        h = jnp.repeat(jnp.repeat(h, 2, axis=1), 2, axis=2)
        h = conv3x3(h, up["w"], up["b"], cfg=cfg)
    return jnp.transpose(h, (0, 3, 1, 2)).astype(jnp.float32)              # NHWC -> NCHW


# --------------------------------------------------------------------------- #
# Pure-JAX reference (same bf16 boundaries / f32-accumulate precision policy)
# --------------------------------------------------------------------------- #
def _ref_gn_silu(x, gamma, beta, groups, eps):
    N, H, W, C = x.shape
    cg = C // groups
    xg = x.reshape(N, H, W, groups, cg)
    mean = xg.mean(axis=(1, 2, 4), keepdims=True)
    var = ((xg - mean) ** 2).mean(axis=(1, 2, 4), keepdims=True)
    y = ((xg - mean) / jnp.sqrt(var + eps)).reshape(N, H, W, C)
    y = y * gamma.reshape(1, 1, 1, C) + beta.reshape(1, 1, 1, C)
    return y * jax.nn.sigmoid(y)


def _ref_conv3x3(x, w, b):
    y = lax.conv_general_dilated(x.astype(jnp.bfloat16), w.astype(jnp.bfloat16),
                                 (1, 1), "SAME",
                                 dimension_numbers=("NHWC", "HWIO", "NHWC"),
                                 preferred_element_type=jnp.float32)
    return y + b.reshape(1, 1, 1, -1)


def _ref_forward(hidden_nchw, res_tuple_nchw, temb, params, *, groups, eps, scale):
    h = jnp.transpose(hidden_nchw, (0, 2, 3, 1)).astype(jnp.bfloat16)
    res_list = [jnp.transpose(r, (0, 2, 3, 1)).astype(jnp.bfloat16) for r in res_tuple_nchw]
    for p in params["resnets"]:
        res = res_list.pop()
        x_in = jnp.concatenate([h, res], axis=-1)                          # bf16
        y1 = _ref_gn_silu(x_in.astype(jnp.float32), p["gn1_g"], p["gn1_b"], groups, eps)
        h1 = _ref_conv3x3(y1, p["conv1_w"], p["conv1_b"])
        t = jnp.dot(jax.nn.silu(temb).astype(jnp.bfloat16),
                    p["temb_w"].astype(jnp.bfloat16),
                    preferred_element_type=jnp.float32) + p["temb_b"]
        h1 = (h1 + t[:, None, None, :]).astype(jnp.bfloat16)
        y2 = _ref_gn_silu(h1.astype(jnp.float32), p["gn2_g"], p["gn2_b"], groups, eps)
        h2 = _ref_conv3x3(y2, p["conv2_w"], p["conv2_b"])
        shortcut = jnp.einsum("nhwc,cd->nhwd", x_in, p["sc_w"].astype(jnp.bfloat16),
                              preferred_element_type=jnp.float32) + p["sc_b"]
        h = (((shortcut + h2) / scale)).astype(jnp.bfloat16)
    if params.get("upsampler") is not None:
        up = params["upsampler"]
        h = jnp.repeat(jnp.repeat(h, 2, axis=1), 2, axis=2)
        h = _ref_conv3x3(h, up["w"], up["b"]).astype(jnp.bfloat16)
    return jnp.transpose(h, (0, 3, 1, 2)).astype(jnp.float32)


# --------------------------------------------------------------------------- #
# Parameter initialization + demo
# --------------------------------------------------------------------------- #
def init_params(key, *, in_channels, prev_output_channel, out_channels,
                temb_channels, num_layers):
    params = {"resnets": []}
    for i in range(num_layers):
        res_skip = in_channels if i == num_layers - 1 else out_channels
        cin = (prev_output_channel if i == 0 else out_channels) + res_skip
        cout = out_channels
        keys = jax.random.split(key, 13)
        key = keys[0]
        rp = {
            "gn1_g": 1.0 + 0.1 * jax.random.normal(keys[1], (cin,), jnp.float32),
            "gn1_b": 0.1 * jax.random.normal(keys[2], (cin,), jnp.float32),
            "conv1_w": 0.1 * jax.random.normal(keys[3], (3, 3, cin, cout), jnp.float32),
            "conv1_b": 0.1 * jax.random.normal(keys[4], (cout,), jnp.float32),
            "temb_w": 0.1 * jax.random.normal(keys[5], (temb_channels, cout), jnp.float32),
            "temb_b": 0.1 * jax.random.normal(keys[6], (cout,), jnp.float32),
            "gn2_g": 1.0 + 0.1 * jax.random.normal(keys[7], (cout,), jnp.float32),
            "gn2_b": 0.1 * jax.random.normal(keys[8], (cout,), jnp.float32),
            "conv2_w": 0.1 * jax.random.normal(keys[9], (3, 3, cout, cout), jnp.float32),
            "conv2_b": 0.1 * jax.random.normal(keys[10], (cout,), jnp.float32),
            # In UpBlock2D cin (= resnet_in + skip) always differs from cout, so the
            # ResnetBlock2D 1x1 conv shortcut is always present.
            "sc_w": 0.1 * jax.random.normal(keys[11], (cin, cout), jnp.float32),
            "sc_b": 0.1 * jax.random.normal(keys[12], (cout,), jnp.float32),
        }
        params["resnets"].append(rp)
    k1, k2, key = jax.random.split(key, 3)
    params["upsampler"] = {
        "w": 0.1 * jax.random.normal(k1, (3, 3, out_channels, out_channels), jnp.float32),
        "b": 0.1 * jax.random.normal(k2, (out_channels,), jnp.float32),
    }
    return params


if __name__ == "__main__":
    # UpBlock2D config (kept small; resnet_groups divides all channel counts).
    in_channels = 32
    prev_output_channel = 32
    out_channels = 32
    temb_channels = 32
    num_layers = 1
    resnet_groups = 8
    resnet_eps = 1e-6
    output_scale_factor = 1.0

    B, H, W = 2, 8, 8

    root = jax.random.PRNGKey(0)
    k_hidden, k_res, k_temb, k_params = jax.random.split(root, 4)

    hidden_states = jax.random.normal(k_hidden, (B, prev_output_channel, H, W), jnp.float32)
    res_hidden_states_tuple = (
        jax.random.normal(k_res, (B, in_channels, H, W), jnp.float32),
    )
    temb = jax.random.normal(k_temb, (B, temb_channels), jnp.float32)

    params = init_params(k_params, in_channels=in_channels,
                         prev_output_channel=prev_output_channel,
                         out_channels=out_channels, temb_channels=temb_channels,
                         num_layers=num_layers)

    out = upblock2d_forward(hidden_states, res_hidden_states_tuple, temb, params,
                            groups=resnet_groups, eps=resnet_eps,
                            output_scale_factor=output_scale_factor)
    out = jax.block_until_ready(out)

    assert out.shape == (B, out_channels, 2 * H, 2 * W)
    assert bool(jnp.all(jnp.isfinite(out)))

    ref = _ref_forward(hidden_states, res_hidden_states_tuple, temb, params,
                       groups=resnet_groups, eps=resnet_eps, scale=output_scale_factor)
    np.testing.assert_allclose(np.asarray(out), np.asarray(ref), rtol=2e-2, atol=2e-2)

    print("KERNEL_OK")
</pallas_src>

<mosaic_0001>
module attributes {stable_mosaic.version = 11 : i64} {
  func.func @_temb_silu_matmul_kernel(%arg0: i32, %arg1: memref<2x32xf32, #tpu.memory_space<vmem>>, %arg2: memref<32x32xbf16, #tpu.memory_space<vmem>>, %arg3: memref<1x32xf32, #tpu.memory_space<vmem>>, %arg4: memref<2x32xf32, #tpu.memory_space<vmem>>) attributes {dimension_semantics = [#tpu.dimension_semantics<arbitrary>], iteration_bounds = array<i64: 1>, scalar_prefetch = 0 : i64, scratch_operands = 0 : i64, tpu.core_type = #tpu.core_type<tc>, window_params = [{pipeline_mode = #tpu.pipeline_mode<synchronous>, transform_indices = @transform_0, window_bounds = array<i64: 2, 32>}, {pipeline_mode = #tpu.pipeline_mode<synchronous>, transform_indices = @transform_1, window_bounds = array<i64: 32, 32>}, {pipeline_mode = #tpu.pipeline_mode<synchronous>, transform_indices = @transform_2, window_bounds = array<i64: 1, 32>}, {pipeline_mode = #tpu.pipeline_mode<synchronous>, transform_indices = @transform_3, window_bounds = array<i64: 2, 32>}]} {
    %c0 = arith.constant 0 : index
    %c0_0 = arith.constant 0 : index
    %0 = vector.load %arg1[%c0, %c0_0] : memref<2x32xf32, #tpu.memory_space<vmem>>, vector<2x32xf32>
    %1 = arith.negf %0 : vector<2x32xf32>
    %2 = math.exp %1 : vector<2x32xf32>
    %cst = arith.constant 1.000000e+00 : f32
    %3 = vector.broadcast %cst : f32 to vector<2x32xf32>
    %4 = arith.addf %3, %2 : vector<2x32xf32>
    %5 = arith.divf %3, %4 : vector<2x32xf32>
    %6 = arith.mulf %0, %5 : vector<2x32xf32>
    %7 = arith.truncf %6 : vector<2x32xf32> to vector<2x32xbf16>
    %c0_1 = arith.constant 0 : index
    %c0_2 = arith.constant 0 : index
    %8 = vector.load %arg2[%c0_1, %c0_2] : memref<32x32xbf16, #tpu.memory_space<vmem>>, vector<32x32xbf16>
    %cst_3 = arith.constant dense<0.000000e+00> : vector<2x32xf32>
    %9 = tpu.matmul %7, %8, %cst_3 {dimension_numbers = #tpu.dot_dimension_numbers<[1], [0], [0], [1], [0, 0, 1, 1], [], []>} : vector<2x32xbf16>, vector<32x32xbf16>, vector<2x32xf32> -> vector<2x32xf32>
    %c0_4 = arith.constant 0 : index
    %c0_5 = arith.constant 0 : index
    %10 = vector.load %arg3[%c0_4, %c0_5] : memref<1x32xf32, #tpu.memory_space<vmem>>, vector<1x32xf32>
    %11 = vector.broadcast %10 : vector<1x32xf32> to vector<2x32xf32>
    %12 = arith.addf %9, %11 : vector<2x32xf32>
    %c0_6 = arith.constant 0 : index
    %c0_7 = arith.constant 0 : index
    %13 = vector.load %arg4[%c0_6, %c0_7] : memref<2x32xf32, #tpu.memory_space<vmem>>, vector<2x32xf32>
    tpu.vector_store %arg4[%c0_6, %c0_7], %12 {strides = array<i32>} : memref<2x32xf32, #tpu.memory_space<vmem>>, vector<2x32xf32>,
    return
  }
  func.func @transform_0(%arg0: i32) -> (i32, i32) {
    %c0_i32 = arith.constant 0 : i32
    %c0_i32_0 = arith.constant 0 : i32
    %c0_i32_1 = arith.constant 0 : i32
    return %c0_i32, %c0_i32_0 : i32, i32
  }
  func.func @transform_1(%arg0: i32) -> (i32, i32) {
    %c0_i32 = arith.constant 0 : i32
    %c0_i32_0 = arith.constant 0 : i32
    %c0_i32_1 = arith.constant 0 : i32
    return %c0_i32, %c0_i32_0 : i32, i32
  }
  func.func @transform_2(%arg0: i32) -> (i32, i32) {
    %c0_i32 = arith.constant 0 : i32
    %c0_i32_0 = arith.constant 0 : i32
    %c0_i32_1 = arith.constant 0 : i32
    return %c0_i32, %c0_i32_0 : i32, i32
  }
  func.func @transform_3(%arg0: i32) -> (i32, i32) {
    %c0_i32 = arith.constant 0 : i32
    %c0_i32_0 = arith.constant 0 : i32
    %c0_i32_1 = arith.constant 0 : i32
    return %c0_i32, %c0_i32_0 : i32, i32
  }
}

</mosaic_0001>

<llo_original>
// kernel: tpu_custom_call.1
$region0: #{tpu_custom_call.1}
  #allocation0 [shape = 'u32[]', space=smem, size = 0x4, offset = 0x4, fixed_abs, tag = 'smem constant byte address 0x4 - core index']
  #allocation1 [shape = 'u32[144,128]{1,0:T(1,128)}', space=vmem, size = 0x12000, scoped, tag = 'internal scratch']
  %s0 = inlined_call_operand.hbm [shape: f32[2,32], index: 0, kind: input, shape index: {}]
  %s1 = inlined_call_operand.hbm [shape: bf16[32,32], index: 1, kind: input, shape index: {}]
  %s2 = inlined_call_operand.vmem [shape: f32[1,32], index: 2, kind: input, shape index: {}]
  %s3 = inlined_call_operand.hbm [shape: f32[2,32], index: 3, kind: output, shape index: {}]
  %s4 = sld [smem:[#allocation0]]
  $region30: #{tpu_custom_call.1} parent=0
    _
  %s6 = ssub.s32 1, %s4
  %s7 = scalar_select 0, %s6, %s4
  $region1: #{tpu_custom_call.1} parent=0
    #allocation2 [shape = 'u8[1024]{0}', space=vmem, size = 0x400, scoped, tag = 'input window, operand 0, single buffered']
    #allocation3 [shape = 's32[1]{0}', space=sflag, size = 0x4, scoped, tag = 'scoped memory for tpu_custom_call.1']
    #allocation4 [shape = 's32[1]{0}', space=sflag, size = 0x4, scoped, tag = 'scoped memory for tpu_custom_call.1']
    #allocation5 [shape = 'u8[8192]{0}', space=vmem, size = 0x2000, scoped, tag = 'input window, operand 1, single buffered']
    #allocation6 [shape = 's32[1]{0}', space=sflag, size = 0x4, scoped, tag = 'scoped memory for tpu_custom_call.1']
    #allocation7 [shape = 'u8[1024]{0}', space=vmem, size = 0x400, scoped, tag = 'output window, operand 0, single buffered']
    %8 = vsyncpa [#allocation3], 0
    %9 = vsyncpa [#allocation6], 0
    %10 = vsyncpa [#allocation4], 0
    // Predicated region
    $region2: #{tpu_custom_call.1} parent=1 // pred_check
      _
    $region3: #{tpu_custom_call.1} parent=1 // pred_check_branch
      %12 = sbr.rel (0) target = $region5
    $region4: #{tpu_custom_call.1} parent=1 // pred_region
      %s14 = ssub.s32 32, 32
      %15 = vsyncadd [#allocation3], %s14
      %s17 = sshll.u32 [#allocation2], 4
      %s18 = int_to_ptr.vmem [resolvable:$true] %s17
      %20 = dma.hbm_to_vmem [thread:$0]  %s0, 32, %s18, [#allocation3]
    $region5: #{tpu_custom_call.1} parent=1 // pred_fallthru
      _
    // Predicated region
    $region6: #{tpu_custom_call.1} parent=1 // pred_check
      _
    $region7: #{tpu_custom_call.1} parent=1 // pred_check_branch
      %22 = sbr.rel (0) target = $region9
    $region8: #{tpu_custom_call.1} parent=1 // pred_region
      %s24 = ssub.s32 256, 256
      %25 = vsyncadd [#allocation6], %s24
      %s26 = sshll.u32 [#allocation5], 4
      %s27 = int_to_ptr.vmem [resolvable:$true] %s26
      %32 = dma.hbm_to_vmem [thread:$0]  %s1, 256, %s27, [#allocation6], 64, 64, 4
    $region9: #{tpu_custom_call.1} parent=1 // pred_fallthru
      _
    // Predicated region
    $region10: #{tpu_custom_call.1} parent=1 // pred_check
      _
    $region11: #{tpu_custom_call.1} parent=1 // pred_check_branch
      %34 = sbr.rel (0) target = $region13
    $region12: #{tpu_custom_call.1} parent=1 // pred_region
      _
    $region13: #{tpu_custom_call.1} parent=1 // pred_fallthru
      _
    // Predicated region
    $region14: #{tpu_custom_call.1} parent=1 // pred_check
      _
    $region15: #{tpu_custom_call.1} parent=1 // pred_check_branch
      %36 = sbr.rel (0) target = $region17
    $region16: #{tpu_custom_call.1} parent=1 // pred_region
      %37 = dma.done [#allocation3], 32
    $region17: #{tpu_custom_call.1} parent=1 // pred_fallthru
      _
    // Predicated region
    $region18: #{tpu_custom_call.1} parent=1 // pred_check
      _
    $region19: #{tpu_custom_call.1} parent=1 // pred_check_branch
      %39 = sbr.rel (0) target = $region21
    $region20: #{tpu_custom_call.1} parent=1 // pred_region
      %40 = dma.done [#allocation6], 256
    $region21: #{tpu_custom_call.1} parent=1 // pred_fallthru
      _
    %v42 = vld [vmem:[#allocation2] sm:$0x3]
    %v43 = vxor.u32 %v42, 2147483648
    %v44 = vmul.f32 %v43, 1.442695
    %v45 = vpow.pop %v44
    %v46 = vadd.f32 %v45, 1.0
    %v47 = vrcp.pop %v46
    %v48 = vmul.f32 1.0, %v47
    %v49 = vmul.f32 %v42, %v48
    %v50 = vpack.c.bf16 %v49, %v49
    %v51 = vld [vmem:[#allocation5] sm:$0xf]
    %v52 = vld [vmem:[#allocation5 + $0x4] sm:$0xf]
    %v53 = vld [vmem:[#allocation5 + $0x8] sm:$0xf]
    %v54 = vld [vmem:[#allocation5 + $0xc] sm:$0xf]
    %v55 = vld [vmem:[%s2] sm:$0x1]
    %v57 = vlaneseq
    %v58 = vshrl.u32 %v57, 7
    %v59 = vsub.s32 0, %v58
    %v60 = vrot.slane %v55, %v59
    %v66 = vunpack.c.l.b16 %v51
    %v67 = vunpack.c.l.b16 %v52
    %v68 = vunpack.c.l.b16 %v53
    %v69 = vunpack.c.l.b16 %v54
    %v70 = vpack.c.b16 %v67, %v66
    %v71 = vpack.c.b16 %v69, %v68
    %vm74 = vcmask 261120
    %v76 = vsel %vm74, %v50, 0
    %78 = vmatprep.subr.bf16.mxu0 0
    %79 = vmatpush1.bf16.msra.mxu0 %v70
    %80 = vmatprep.subr.bf16.mxu0 0
    %81 = vmatpush1.bf16.msra.mxu0 %v71
    %82 = vmatprep.subr.bf16.mxu0 0
    %83 = vmatpush1.bf16.msra.mxu0 0
    %84 = vmatprep.subr.bf16.mxu0 0
    %85 = vmatpush1.bf16.msra.mxu0 0
    %86 = vmatprep.subr.bf16.mxu0 0
    %87 = vmatpush1.bf16.msra.mxu0 0
    %88 = vmatprep.subr.bf16.mxu0 0
    %89 = vmatpush1.bf16.msra.mxu0 0
    %90 = vmatprep.subr.bf16.mxu0 0
    %91 = vmatpush1.bf16.msra.mxu0 0
    %92 = vmatprep.subr.bf16.mxu0 0
    %93 = vmatpush1.bf16.msra.mxu0 0
    %94 = vmatprep.subr.bf16.mxu0 0
    %95 = vmatpush1.bf16.msra.mxu0 0
    %96 = vmatprep.subr.bf16.mxu0 0
    %97 = vmatpush1.bf16.msra.mxu0 0
    %98 = vmatprep.subr.bf16.mxu0 0
    %99 = vmatpush1.bf16.msra.mxu0 0
    %100 = vmatprep.subr.bf16.mxu0 0
    %101 = vmatpush1.bf16.msra.mxu0 0
    %102 = vmatprep.subr.bf16.mxu0 0
    %103 = vmatpush1.bf16.msra.mxu0 0
    %104 = vmatprep.subr.bf16.mxu0 0
    %105 = vmatpush1.bf16.msra.mxu0 0
    %106 = vmatprep.subr.bf16.mxu0 0
    %107 = vmatpush1.bf16.msra.mxu0 0
    %108 = vmatprep.subr.bf16.mxu0 0
    %109 = vmatpush1.bf16.msra.mxu0 0
    %110 = vmatprep.mubr.bf16.mxu0 0
    %111 = vmatmul.mubr.bf16.gmra.mrb[0].mxu0 %v76
    %v112 = vpop.f32.mrb[0].mxu0
    %v113 = vadd.f32 %v60, %v112
    %v114 = vpop.f32.mrb[0].mxu0
    %v115 = vpop.f32.mrb[0].mxu0
    %v116 = vpop.f32.mrb[0].mxu0
    %117 = vdwg.mxu0
    %vm118 = vcmask 254976
    %119 = vst.msk [vmem:[#allocation7] sm:$0x3] %vm118, %v113
    // Predicated region
    $region22: #{tpu_custom_call.1} parent=1 // pred_check
      _
    $region23: #{tpu_custom_call.1} parent=1 // pred_check_branch
      %121 = sbr.rel (0) target = $region25
    $region24: #{tpu_custom_call.1} parent=1 // pred_region
      %s123 = ssub.s32 32, 32
      %124 = vsyncadd [#allocation4], %s123
      %s126 = sshll.u32 [#allocation7], 4
      %s127 = int_to_ptr.vmem [resolvable:$true] %s126
      %129 = dma.vmem_to_hbm [thread:$0]  %s127, 32, %s3, [#allocation4]
    $region25: #{tpu_custom_call.1} parent=1 // pred_fallthru
      _
    // Predicated region
    $region26: #{tpu_custom_call.1} parent=1 // pred_check
      _
    $region27: #{tpu_custom_call.1} parent=1 // pred_check_branch
      %131 = sbr.rel (0) target = $region29
    $region28: #{tpu_custom_call.1} parent=1 // pred_region
      %132 = dma.done [#allocation4], 32
    $region29: #{tpu_custom_call.1} parent=1 // pred_fallthru
      _
    %133 = vsyncpa [#allocation3], 1
    %134 = vsyncpa [#allocation6], 1
    %135 = vsyncpa [#allocation4], 1

</llo_original>
